<compile_context>
chip_gen: v6e
topology: v6e:2x2x1
jax: 0.10.0
libtpu: 0.0.40
codegen_flags: <defaults>
</compile_context>

<pallas_src>
import functools

import jax
import jax.numpy as jnp
from jax import lax
from jax.experimental import pallas as pl
from jax.experimental.pallas import tpu as pltpu

LANES = 512              # lane width of the working slab (multiple of 128)
SUBLANE = 8
MAX_BLOCK_ROWS = 2048    # 2048 x 512 f32 = 4 MiB per input per grid step
VMEM_LIMIT_BYTES = 48 * 1024 * 1024


def _round_up(x, m):
    return (x + m - 1) // m * m


def _min_block_rows(dtype):
    # Native sublane tiling: 8 rows for 4-byte, 16 for 2-byte, 32 for 1-byte.
    return {4: 8, 2: 16, 1: 32}.get(jnp.dtype(dtype).itemsize, 8)


def _iou_partial_kernel(x_ref, t_ref, inter_ref, total_ref, *,
                        block_rows, n_valid, needs_mask):
    i = pl.program_id(0)

    @pl.when(i == 0)
    def _init():
        inter_ref[...] = jnp.zeros_like(inter_ref)
        total_ref[...] = jnp.zeros_like(total_ref)

    # Native-dtype tiles travel over HBM; the single upcast happens here.
    xf = x_ref[...].astype(jnp.float32)
    tf = t_ref[...].astype(jnp.float32)
    # sigmoid(x) == 0.5 * tanh(0.5 * x) + 0.5 : one EUP push per element.
    sx = 0.5 * jnp.tanh(0.5 * xf) + 0.5

    folds = block_rows // SUBLANE

    def _accumulate(xv, tv):
        # Lane-dense partial sums: fold (block_rows, LANES) -> (8, LANES) with
        # leading-axis adds (pure VPU); accumulate into the resident outputs.
        inter_ref[...] += jnp.sum((xv * tv).reshape(folds, SUBLANE, LANES), axis=0)
        total_ref[...] += jnp.sum((xv + tv).reshape(folds, SUBLANE, LANES), axis=0)

    if needs_mask:
        # Padded zeros / DMA-clamped garbage only ever live in the LAST block,
        # so the mask is built on that step only.
        last = pl.num_programs(0) - 1

        @pl.when(i != last)
        def _full():
            _accumulate(sx, tf)

        @pl.when(i == last)
        def _ragged():
            base = i * (block_rows * LANES)
            row_ids = lax.broadcasted_iota(jnp.int32, (block_rows, LANES), 0)
            lane_ids = lax.broadcasted_iota(jnp.int32, (block_rows, LANES), 1)
            valid = base + row_ids * LANES + lane_ids < n_valid
            # where() discards the unselected branch, so sigmoid(garbage) and
            # sigmoid(pad-zero)=0.5 never reach the accumulators.
            _accumulate(jnp.where(valid, sx, 0.0), jnp.where(valid, tf, 0.0))
    else:
        _accumulate(sx, tf)


def iou_loss(inputs, targets, smooth=1.0):
    """Pallas equivalent of IoULoss.forward. Returns a scalar float32."""
    x = inputs.reshape(-1)
    t = targets.reshape(-1)
    # Narrow DMA dtypes: bool rides in as int8 (1 B/elem). Everything else
    # stays native; the f32 upcast happens in-register inside the kernel.
    if x.dtype == jnp.bool_:
        x = x.astype(jnp.int8)
    if t.dtype == jnp.bool_:
        t = t.astype(jnp.int8)

    n = x.shape[0]
    rows = pl.cdiv(n, LANES)
    min_rows = max(_min_block_rows(x.dtype), _min_block_rows(t.dtype))

    if rows <= MAX_BLOCK_ROWS:
        # Small input: single grid step; round the 2-D view up to the native
        # sublane tile so the block shape is legal for the input dtypes.
        rows_arr = _round_up(rows, min_rows)
        block_rows = rows_arr
    else:
        # Bulk input: fixed big blocks. The ragged last block is handled by
        # Pallas partial-block DMA clamping + the in-kernel mask, so no pad
        # copy is needed when numel is a multiple of LANES (the common case).
        rows_arr = rows
        block_rows = MAX_BLOCK_ROWS

    pad = rows_arr * LANES - n
    if pad:
        # Only taken for sub-block inputs or numel % 512 != 0; padded zeros
        # are masked in-kernel (sigmoid(0)=0.5 must not leak into the sums).
        x = jnp.pad(x, (0, pad))
        t = jnp.pad(t, (0, pad))

    x2 = x.reshape(rows_arr, LANES)   # bitcast when pad == 0
    t2 = t.reshape(rows_arr, LANES)

    grid = pl.cdiv(rows_arr, block_rows)
    needs_mask = grid * block_rows * LANES != n

    kernel = functools.partial(
        _iou_partial_kernel,
        block_rows=block_rows,
        n_valid=n,
        needs_mask=needs_mask,
    )

    # TODO(synk): on v7x, shard the row axis across the two TensorCores
    # (CORE_PARALLEL / pl.core_map); kept a single "arbitrary" axis here for
    # portability across v5e/v6e/v7x.
    inter_p, total_p = pl.pallas_call(
        kernel,
        out_shape=(
            jax.ShapeDtypeStruct((SUBLANE, LANES), jnp.float32),
            jax.ShapeDtypeStruct((SUBLANE, LANES), jnp.float32),
        ),
        grid_spec=pltpu.PrefetchScalarGridSpec(
            num_scalar_prefetch=0,
            grid=(grid,),
            in_specs=[
                pl.BlockSpec((block_rows, LANES), lambda i: (i, 0)),
                pl.BlockSpec((block_rows, LANES), lambda i: (i, 0)),
            ],
            out_specs=[
                pl.BlockSpec((SUBLANE, LANES), lambda i: (0, 0)),
                pl.BlockSpec((SUBLANE, LANES), lambda i: (0, 0)),
            ],
        ),
        compiler_params=pltpu.CompilerParams(
            dimension_semantics=("arbitrary",),
            vmem_limit_bytes=VMEM_LIMIT_BYTES,
        ),
    )(x2, t2)

    # Tiny epilogue in plain JAX: reduce the two (8, 512) partial slabs.
    intersection = jnp.sum(inter_p)
    total = jnp.sum(total_p)
    union = total - intersection
    return 1.0 - (intersection + smooth) / (union + smooth)


def _reference(inputs, targets, smooth=1.0):
    x = jax.nn.sigmoid(inputs.astype(jnp.float32)).reshape(-1)
    t = targets.astype(jnp.float32).reshape(-1)
    inter = jnp.sum(x * t)
    total = jnp.sum(x + t)
    union = total - inter
    return 1.0 - (inter + smooth) / (union + smooth)


if __name__ == "__main__":
    key = jax.random.PRNGKey(0)
    k1, k2 = jax.random.split(key)
    # Small shapes consistent with a segmentation logit/mask pair.
    inputs = jax.random.normal(k1, (2, 4, 16, 16), dtype=jnp.float32)
    targets = (jax.random.uniform(k2, (2, 4, 16, 16)) > 0.5).astype(jnp.float32)

    loss = iou_loss(inputs, targets, smooth=1.0)
    loss = jax.block_until_ready(loss)

    ref = _reference(inputs, targets, smooth=1.0)
    assert jnp.allclose(loss, ref, atol=1e-5, rtol=1e-5), (loss, ref)
    print("KERNEL_OK")
</pallas_src>

<mosaic_0001>
module attributes {stable_mosaic.version = 11 : i64} {
  func.func @_iou_partial_kernel(%arg0: i32, %arg1: memref<8x512xf32, #tpu.memory_space<vmem>>, %arg2: memref<8x512xf32, #tpu.memory_space<vmem>>, %arg3: memref<8x512xf32, #tpu.memory_space<vmem>>, %arg4: memref<8x512xf32, #tpu.memory_space<vmem>>) attributes {dimension_semantics = [#tpu.dimension_semantics<arbitrary>], iteration_bounds = array<i64: 1>, scalar_prefetch = 0 : i64, scratch_operands = 0 : i64, tpu.core_type = #tpu.core_type<tc>, window_params = [{transform_indices = @transform_0, window_bounds = array<i64: 8, 512>}, {transform_indices = @transform_1, window_bounds = array<i64: 8, 512>}, {pipeline_mode = #tpu.pipeline_mode<synchronous>, transform_indices = @transform_2, window_bounds = array<i64: 8, 512>}, {pipeline_mode = #tpu.pipeline_mode<synchronous>, transform_indices = @transform_3, window_bounds = array<i64: 8, 512>}]} {
    %c0_i32 = arith.constant 0 : i32
    %0 = arith.cmpi eq, %arg0, %c0_i32 : i32
    %1 = arith.extui %0 : i1 to i32
    %c0_i32_0 = arith.constant 0 : i32
    %2 = arith.cmpi ne, %1, %c0_i32_0 : i32
    scf.if %2 {
      %cst_10 = arith.constant 0.000000e+00 : f32
      %18 = vector.broadcast %cst_10 : f32 to vector<8x512xf32>
      %c0_11 = arith.constant 0 : index
      %c0_12 = arith.constant 0 : index
      %19 = vector.load %arg3[%c0_11, %c0_12] : memref<8x512xf32, #tpu.memory_space<vmem>>, vector<8x512xf32>
      tpu.vector_store %arg3[%c0_11, %c0_12], %18 {strides = array<i32>} : memref<8x512xf32, #tpu.memory_space<vmem>>, vector<8x512xf32>,
      %cst_13 = arith.constant 0.000000e+00 : f32
      %20 = vector.broadcast %cst_13 : f32 to vector<8x512xf32>
      %c0_14 = arith.constant 0 : index
      %c0_15 = arith.constant 0 : index
      %21 = vector.load %arg4[%c0_14, %c0_15] : memref<8x512xf32, #tpu.memory_space<vmem>>, vector<8x512xf32>
      tpu.vector_store %arg4[%c0_14, %c0_15], %20 {strides = array<i32>} : memref<8x512xf32, #tpu.memory_space<vmem>>, vector<8x512xf32>,
    } else {
    }
    %c0 = arith.constant 0 : index
    %c0_1 = arith.constant 0 : index
    %3 = vector.load %arg1[%c0, %c0_1] : memref<8x512xf32, #tpu.memory_space<vmem>>, vector<8x512xf32>
    %c0_2 = arith.constant 0 : index
    %c0_3 = arith.constant 0 : index
    %4 = vector.load %arg2[%c0_2, %c0_3] : memref<8x512xf32, #tpu.memory_space<vmem>>, vector<8x512xf32>
    %cst = arith.constant 5.000000e-01 : f32
    %5 = vector.broadcast %cst : f32 to vector<8x512xf32>
    %6 = arith.mulf %5, %3 : vector<8x512xf32>
    %7 = math.tanh %6 : vector<8x512xf32>
    %cst_4 = arith.constant 5.000000e-01 : f32
    %8 = vector.broadcast %cst_4 : f32 to vector<8x512xf32>
    %9 = arith.mulf %8, %7 : vector<8x512xf32>
    %cst_5 = arith.constant 5.000000e-01 : f32
    %10 = vector.broadcast %cst_5 : f32 to vector<8x512xf32>
    %11 = arith.addf %9, %10 : vector<8x512xf32>
    %c0_i32_6 = arith.constant 0 : i32
    %12 = arith.cmpi ne, %arg0, %c0_i32_6 : i32
    %13 = arith.extui %12 : i1 to i32
    %c0_i32_7 = arith.constant 0 : i32
    %14 = arith.cmpi ne, %13, %c0_i32_7 : i32
    scf.if %14 {
      %c0_10 = arith.constant 0 : index
      %c0_11 = arith.constant 0 : index
      %18 = vector.load %arg3[%c0_10, %c0_11] : memref<8x512xf32, #tpu.memory_space<vmem>>, vector<8x512xf32>
      %19 = arith.mulf %11, %4 : vector<8x512xf32>
      %20 = vector.shape_cast %19 : vector<8x512xf32> to vector<1x8x512xf32>
      %cst_12 = arith.constant dense<0.000000e+00> : vector<8x512xf32>
      %21 = vector.multi_reduction <add>, %20, %cst_12 [0] : vector<1x8x512xf32> to vector<8x512xf32>
      %22 = arith.addf %18, %21 : vector<8x512xf32>
      %c0_13 = arith.constant 0 : index
      %c0_14 = arith.constant 0 : index
      %23 = vector.load %arg3[%c0_13, %c0_14] : memref<8x512xf32, #tpu.memory_space<vmem>>, vector<8x512xf32>
      tpu.vector_store %arg3[%c0_13, %c0_14], %22 {strides = array<i32>} : memref<8x512xf32, #tpu.memory_space<vmem>>, vector<8x512xf32>,
      %c0_15 = arith.constant 0 : index
      %c0_16 = arith.constant 0 : index
      %24 = vector.load %arg4[%c0_15, %c0_16] : memref<8x512xf32, #tpu.memory_space<vmem>>, vector<8x512xf32>
      %25 = arith.addf %11, %4 : vector<8x512xf32>
      %26 = vector.shape_cast %25 : vector<8x512xf32> to vector<1x8x512xf32>
      %cst_17 = arith.constant dense<0.000000e+00> : vector<8x512xf32>
      %27 = vector.multi_reduction <add>, %26, %cst_17 [0] : vector<1x8x512xf32> to vector<8x512xf32>
      %28 = arith.addf %24, %27 : vector<8x512xf32>
      %c0_18 = arith.constant 0 : index
      %c0_19 = arith.constant 0 : index
      %29 = vector.load %arg4[%c0_18, %c0_19] : memref<8x512xf32, #tpu.memory_space<vmem>>, vector<8x512xf32>
      tpu.vector_store %arg4[%c0_18, %c0_19], %28 {strides = array<i32>} : memref<8x512xf32, #tpu.memory_space<vmem>>, vector<8x512xf32>,
    } else {
    }
    %c0_i32_8 = arith.constant 0 : i32
    %15 = arith.cmpi eq, %arg0, %c0_i32_8 : i32
    %16 = arith.extui %15 : i1 to i32
    %c0_i32_9 = arith.constant 0 : i32
    %17 = arith.cmpi ne, %16, %c0_i32_9 : i32
    scf.if %17 {
      %c4096_i32 = arith.constant 4096 : i32
      %18 = arith.muli %arg0, %c4096_i32 : i32
      %19 = tpu.iota {dimensions = array<i32: 0>} : vector<8x512xi32>
      %20 = tpu.iota {dimensions = array<i32: 1>} : vector<8x512xi32>
      %c512_i32 = arith.constant 512 : i32
      %21 = vector.broadcast %c512_i32 : i32 to vector<8x512xi32>
      %22 = arith.muli %19, %21 : vector<8x512xi32>
      %23 = vector.broadcast %18 : i32 to vector<8x512xi32>
      %24 = arith.addi %23, %22 : vector<8x512xi32>
      %25 = arith.addi %24, %20 : vector<8x512xi32>
      %c2048_i32 = arith.constant 2048 : i32
      %26 = vector.broadcast %c2048_i32 : i32 to vector<8x512xi32>
      %27 = arith.cmpi slt, %25, %26 : vector<8x512xi32>
      %cst_10 = arith.constant 0.000000e+00 : f32
      %28 = vector.broadcast %cst_10 : f32 to vector<8x512xf32>
      %29 = arith.select %27, %11, %28 : vector<8x512xi1>, vector<8x512xf32>
      %cst_11 = arith.constant 0.000000e+00 : f32
      %30 = vector.broadcast %cst_11 : f32 to vector<8x512xf32>
      %31 = arith.select %27, %4, %30 : vector<8x512xi1>, vector<8x512xf32>
      %c0_12 = arith.constant 0 : index
      %c0_13 = arith.constant 0 : index
      %32 = vector.load %arg3[%c0_12, %c0_13] : memref<8x512xf32, #tpu.memory_space<vmem>>, vector<8x512xf32>
      %33 = arith.mulf %29, %31 : vector<8x512xf32>
      %34 = vector.shape_cast %33 : vector<8x512xf32> to vector<1x8x512xf32>
      %cst_14 = arith.constant dense<0.000000e+00> : vector<8x512xf32>
      %35 = vector.multi_reduction <add>, %34, %cst_14 [0] : vector<1x8x512xf32> to vector<8x512xf32>
      %36 = arith.addf %32, %35 : vector<8x512xf32>
      %c0_15 = arith.constant 0 : index
      %c0_16 = arith.constant 0 : index
      %37 = vector.load %arg3[%c0_15, %c0_16] : memref<8x512xf32, #tpu.memory_space<vmem>>, vector<8x512xf32>
      tpu.vector_store %arg3[%c0_15, %c0_16], %36 {strides = array<i32>} : memref<8x512xf32, #tpu.memory_space<vmem>>, vector<8x512xf32>,
      %c0_17 = arith.constant 0 : index
      %c0_18 = arith.constant 0 : index
      %38 = vector.load %arg4[%c0_17, %c0_18] : memref<8x512xf32, #tpu.memory_space<vmem>>, vector<8x512xf32>
      %39 = arith.addf %29, %31 : vector<8x512xf32>
      %40 = vector.shape_cast %39 : vector<8x512xf32> to vector<1x8x512xf32>
      %cst_19 = arith.constant dense<0.000000e+00> : vector<8x512xf32>
      %41 = vector.multi_reduction <add>, %40, %cst_19 [0] : vector<1x8x512xf32> to vector<8x512xf32>
      %42 = arith.addf %38, %41 : vector<8x512xf32>
      %c0_20 = arith.constant 0 : index
      %c0_21 = arith.constant 0 : index
      %43 = vector.load %arg4[%c0_20, %c0_21] : memref<8x512xf32, #tpu.memory_space<vmem>>, vector<8x512xf32>
      tpu.vector_store %arg4[%c0_20, %c0_21], %42 {strides = array<i32>} : memref<8x512xf32, #tpu.memory_space<vmem>>, vector<8x512xf32>,
    } else {
    }
    return
  }
  func.func @transform_0(%arg0: i32) -> (i32, i32) {
    %c0_i32 = arith.constant 0 : i32
    %c0_i32_0 = arith.constant 0 : i32
    return %arg0, %c0_i32 : i32, i32
  }
  func.func @transform_1(%arg0: i32) -> (i32, i32) {
    %c0_i32 = arith.constant 0 : i32
    %c0_i32_0 = arith.constant 0 : i32
    return %arg0, %c0_i32 : i32, i32
  }
  func.func @transform_2(%arg0: i32) -> (i32, i32) {
    %c0_i32 = arith.constant 0 : i32
    %c0_i32_0 = arith.constant 0 : i32
    %c0_i32_1 = arith.constant 0 : i32
    return %c0_i32, %c0_i32_0 : i32, i32
  }
  func.func @transform_3(%arg0: i32) -> (i32, i32) {
    %c0_i32 = arith.constant 0 : i32
    %c0_i32_0 = arith.constant 0 : i32
    %c0_i32_1 = arith.constant 0 : i32
    return %c0_i32, %c0_i32_0 : i32, i32
  }
}

</mosaic_0001>

<llo_original>
// kernel: tpu_custom_call.1
$region0: #{tpu_custom_call.1}
  #allocation0 [shape = 'u32[]', space=smem, size = 0x4, offset = 0x4, fixed_abs, tag = 'smem constant byte address 0x4 - core index']
  #allocation1 [shape = 'u32[144,128]{1,0:T(1,128)}', space=vmem, size = 0x12000, scoped, tag = 'internal scratch']
  %s0 = inlined_call_operand.hbm [shape: f32[8,512], index: 0, kind: input, shape index: {}]
  %s1 = inlined_call_operand.hbm [shape: f32[8,512], index: 1, kind: input, shape index: {}]
  %s2 = inlined_call_operand.hbm [shape: f32[8,512], index: 2, kind: output, shape index: {0}]
  %s3 = inlined_call_operand.hbm [shape: f32[8,512], index: 3, kind: output, shape index: {1}]
  %4 = xla_tuple %s2, %s3
  %s5 = sld [smem:[#allocation0]]
  $region46: #{tpu_custom_call.1} parent=0
    _
  %s7 = ssub.s32 1, %s5
  %s8 = scalar_select 0, %s7, %s5
  $region1: #{tpu_custom_call.1} parent=0
    #allocation2 [shape = 'u8[16384]{0}', space=vmem, size = 0x4000, scoped, tag = 'input window, operand 0, single buffered']
    #allocation3 [shape = 's32[1]{0}', space=sflag, size = 0x4, scoped, tag = 'scoped memory for tpu_custom_call.1']
    #allocation4 [shape = 's32[1]{0}', space=sflag, size = 0x4, scoped, tag = 'scoped memory for tpu_custom_call.1']
    #allocation5 [shape = 'u8[16384]{0}', space=vmem, size = 0x4000, scoped, tag = 'input window, operand 1, single buffered']
    #allocation6 [shape = 's32[1]{0}', space=sflag, size = 0x4, scoped, tag = 'scoped memory for tpu_custom_call.1']
    #allocation7 [shape = 'u8[16384]{0}', space=vmem, size = 0x4000, scoped, tag = 'output window, operand 0, single buffered']
    #allocation8 [shape = 'u8[16384]{0}', space=vmem, size = 0x4000, scoped, tag = 'output window, operand 1, single buffered']
    #allocation9 [shape = 's32[1]{0}', space=sflag, size = 0x4, scoped, tag = 'scoped memory for tpu_custom_call.1']
    %9 = vsyncpa [#allocation3], 0
    %10 = vsyncpa [#allocation6], 0
    %11 = vsyncpa [#allocation4], 0
    %12 = vsyncpa [#allocation9], 0
    // Predicated region
    $region2: #{tpu_custom_call.1} parent=1 // pred_check
      _
    $region3: #{tpu_custom_call.1} parent=1 // pred_check_branch
      %14 = sbr.rel (0) target = $region5
    $region4: #{tpu_custom_call.1} parent=1 // pred_region
      %s16 = ssub.s32 512, 512
      %17 = vsyncadd [#allocation3], %s16
      %s19 = sshll.u32 [#allocation2], 4
      %s20 = int_to_ptr.vmem [resolvable:$true] %s19
      %22 = dma.hbm_to_vmem [thread:$0]  %s0, 512, %s20, [#allocation3]
    $region5: #{tpu_custom_call.1} parent=1 // pred_fallthru
      _
    // Predicated region
    $region6: #{tpu_custom_call.1} parent=1 // pred_check
      _
    $region7: #{tpu_custom_call.1} parent=1 // pred_check_branch
      %24 = sbr.rel (0) target = $region9
    $region8: #{tpu_custom_call.1} parent=1 // pred_region
      %s26 = ssub.s32 512, 512
      %27 = vsyncadd [#allocation6], %s26
      %s29 = sshll.u32 [#allocation5], 4
      %s30 = int_to_ptr.vmem [resolvable:$true] %s29
      %32 = dma.hbm_to_vmem [thread:$0]  %s1, 512, %s30, [#allocation6]
    $region9: #{tpu_custom_call.1} parent=1 // pred_fallthru
      _
    // Predicated region
    $region10: #{tpu_custom_call.1} parent=1 // pred_check
      _
    $region11: #{tpu_custom_call.1} parent=1 // pred_check_branch
      %34 = sbr.rel (0) target = $region13
    $region12: #{tpu_custom_call.1} parent=1 // pred_region
      %35 = dma.done [#allocation3], 512
    $region13: #{tpu_custom_call.1} parent=1 // pred_fallthru
      _
    // Predicated region
    $region14: #{tpu_custom_call.1} parent=1 // pred_check
      _
    $region15: #{tpu_custom_call.1} parent=1 // pred_check_branch
      %37 = sbr.rel (0) target = $region17
    $region16: #{tpu_custom_call.1} parent=1 // pred_region
      %38 = dma.done [#allocation6], 512
    $region17: #{tpu_custom_call.1} parent=1 // pred_fallthru
      _
    %p39 = scmp.eq.s32.totalorder 0, 0
    // Predicated region
    $region18: #{tpu_custom_call.1} parent=1 // pred_check
      %p40 = pneg %p39
    $region19: #{tpu_custom_call.1} parent=1 // pred_check_branch
      %42 = sbr.rel (%p40) target = $region21
    $region20: #{tpu_custom_call.1} parent=1 // pred_region
      %43 = vst [vmem:[#allocation7] sm:$0xff] 0.0
      %44 = vst [vmem:[#allocation7 + $0x8] sm:$0xff] 0.0
      %45 = vst [vmem:[#allocation7 + $0x10] sm:$0xff] 0.0
      %46 = vst [vmem:[#allocation7 + $0x18] sm:$0xff] 0.0
      %47 = vst [vmem:[#allocation8] sm:$0xff] 0.0
      %48 = vst [vmem:[#allocation8 + $0x8] sm:$0xff] 0.0
      %49 = vst [vmem:[#allocation8 + $0x10] sm:$0xff] 0.0
      %50 = vst [vmem:[#allocation8 + $0x18] sm:$0xff] 0.0
    $region21: #{tpu_custom_call.1} parent=1 // pred_fallthru
      _
    %v51 = vld [vmem:[#allocation2] sm:$0xff]
    %v52 = vld [vmem:[#allocation2 + $0x8] sm:$0xff]
    %v53 = vld [vmem:[#allocation2 + $0x10] sm:$0xff]
    %v54 = vld [vmem:[#allocation2 + $0x18] sm:$0xff]
    %v55 = vld [vmem:[#allocation5] sm:$0xff]
    %v56 = vld [vmem:[#allocation5 + $0x8] sm:$0xff]
    %v57 = vld [vmem:[#allocation5 + $0x10] sm:$0xff]
    %v58 = vld [vmem:[#allocation5 + $0x18] sm:$0xff]
    %v59 = vmul.f32 %v51, 0.5
    %v60 = vmul.f32 %v52, 0.5
    %v61 = vmul.f32 %v53, 0.5
    %v62 = vmul.f32 %v54, 0.5
    %v63 = vtanh.pop %v59
    %v64 = vtanh.pop %v60
    %v65 = vtanh.pop %v61
    %v66 = vtanh.pop %v62
    %v67 = vmul.f32 %v63, 0.5
    %v68 = vmul.f32 %v64, 0.5
    %v69 = vmul.f32 %v65, 0.5
    %v70 = vmul.f32 %v66, 0.5
    %v71 = vadd.f32 %v67, 0.5
    %v72 = vadd.f32 %v68, 0.5
    %v73 = vadd.f32 %v69, 0.5
    %v74 = vadd.f32 %v70, 0.5
    %p75 = scmp.ne.s32.totalorder 0, 0
    // Predicated region
    $region22: #{tpu_custom_call.1} parent=1 // pred_check
      %p76 = pneg %p75
    $region23: #{tpu_custom_call.1} parent=1 // pred_check_branch
      %78 = sbr.rel (%p76) target = $region25
    $region24: #{tpu_custom_call.1} parent=1 // pred_region
      %v79 = vld [vmem:[#allocation7] sm:$0xff]
      %v80 = vld [vmem:[#allocation7 + $0x8] sm:$0xff]
      %v81 = vld [vmem:[#allocation7 + $0x10] sm:$0xff]
      %v82 = vld [vmem:[#allocation7 + $0x18] sm:$0xff]
      %v83 = vmul.f32 %v71, %v55
      %v84 = vmul.f32 %v72, %v56
      %v85 = vmul.f32 %v73, %v57
      %v86 = vmul.f32 %v74, %v58
      %v87 = vadd.f32 %v83, 0.0
      %v88 = vadd.f32 %v84, 0.0
      %v89 = vadd.f32 %v85, 0.0
      %v90 = vadd.f32 %v86, 0.0
      %v91 = vadd.f32 %v79, %v87
      %v92 = vadd.f32 %v80, %v88
      %v93 = vadd.f32 %v81, %v89
      %v94 = vadd.f32 %v82, %v90
      %95 = vst [vmem:[#allocation7] sm:$0xff] %v91
      %96 = vst [vmem:[#allocation7 + $0x8] sm:$0xff] %v92
      %97 = vst [vmem:[#allocation7 + $0x10] sm:$0xff] %v93
      %98 = vst [vmem:[#allocation7 + $0x18] sm:$0xff] %v94
      %v99 = vld [vmem:[#allocation8] sm:$0xff]
      %v100 = vld [vmem:[#allocation8 + $0x8] sm:$0xff]
      %v101 = vld [vmem:[#allocation8 + $0x10] sm:$0xff]
      %v102 = vld [vmem:[#allocation8 + $0x18] sm:$0xff]
      %v103 = vadd.f32 %v71, %v55
      %v104 = vadd.f32 %v72, %v56
      %v105 = vadd.f32 %v73, %v57
      %v106 = vadd.f32 %v74, %v58
      %v107 = vadd.f32 %v103, 0.0
      %v108 = vadd.f32 %v104, 0.0
      %v109 = vadd.f32 %v105, 0.0
      %v110 = vadd.f32 %v106, 0.0
      %v111 = vadd.f32 %v99, %v107
      %v112 = vadd.f32 %v100, %v108
      %v113 = vadd.f32 %v101, %v109
      %v114 = vadd.f32 %v102, %v110
      %115 = vst [vmem:[#allocation8] sm:$0xff] %v111
      %116 = vst [vmem:[#allocation8 + $0x8] sm:$0xff] %v112
      %117 = vst [vmem:[#allocation8 + $0x10] sm:$0xff] %v113
      %118 = vst [vmem:[#allocation8 + $0x18] sm:$0xff] %v114
    $region25: #{tpu_custom_call.1} parent=1 // pred_fallthru
      _
    // Predicated region
    $region26: #{tpu_custom_call.1} parent=1 // pred_check
      %p119 = pneg %p39
    $region27: #{tpu_custom_call.1} parent=1 // pred_check_branch
      %121 = sbr.rel (%p119) target = $region29
    $region28: #{tpu_custom_call.1} parent=1 // pred_region
      %s122 = smul.u32 0, 4096
      %v123 = vlaneseq
      %v124 = vshrl.u32 %v123, 7
      %v125 = vlaneseq
      %v126 = vand.u32 %v125, 127
      %v127 = vadd.s32 %v126, 128
      %v128 = vadd.s32 %v126, 256
      %v129 = vadd.s32 %v126, 384
      %v130 = vmul.u32 %v124, 512
      %v131 = vstv %s122
      %v132 = vadd.s32 %v131, %v130
      %v133 = vadd.s32 %v132, %v126
      %v134 = vadd.s32 %v132, %v127
      %v135 = vadd.s32 %v132, %v128
      %v136 = vadd.s32 %v132, %v129
      %vm137 = vcmp.lt.s32.totalorder %v133, 2048
      %vm138 = vcmp.lt.s32.totalorder %v134, 2048
      %vm139 = vcmp.lt.s32.totalorder %v135, 2048
      %vm140 = vcmp.lt.s32.totalorder %v136, 2048
      %v141 = vsel %vm137, %v71, 0.0
      %v142 = vsel %vm138, %v72, 0.0
      %v143 = vsel %vm139, %v73, 0.0
      %v144 = vsel %vm140, %v74, 0.0
      %v145 = vsel %vm137, %v55, 0.0
      %v146 = vsel %vm138, %v56, 0.0
      %v147 = vsel %vm139, %v57, 0.0
      %v148 = vsel %vm140, %v58, 0.0
      %v149 = vld [vmem:[#allocation7] sm:$0xff]
      %v150 = vld [vmem:[#allocation7 + $0x8] sm:$0xff]
      %v151 = vld [vmem:[#allocation7 + $0x10] sm:$0xff]
      %v152 = vld [vmem:[#allocation7 + $0x18] sm:$0xff]
      %v153 = vmul.f32 %v141, %v145
      %v154 = vmul.f32 %v142, %v146
      %v155 = vmul.f32 %v143, %v147
      %v156 = vmul.f32 %v144, %v148
      %v157 = vadd.f32 %v153, 0.0
      %v158 = vadd.f32 %v154, 0.0
      %v159 = vadd.f32 %v155, 0.0
      %v160 = vadd.f32 %v156, 0.0
      %v161 = vadd.f32 %v149, %v157
      %v162 = vadd.f32 %v150, %v158
      %v163 = vadd.f32 %v151, %v159
      %v164 = vadd.f32 %v152, %v160
      %165 = vst [vmem:[#allocation7] sm:$0xff] %v161
      %166 = vst [vmem:[#allocation7 + $0x8] sm:$0xff] %v162
      %167 = vst [vmem:[#allocation7 + $0x10] sm:$0xff] %v163
      %168 = vst [vmem:[#allocation7 + $0x18] sm:$0xff] %v164
      %v169 = vld [vmem:[#allocation8] sm:$0xff]
      %v170 = vld [vmem:[#allocation8 + $0x8] sm:$0xff]
      %v171 = vld [vmem:[#allocation8 + $0x10] sm:$0xff]
      %v172 = vld [vmem:[#allocation8 + $0x18] sm:$0xff]
      %v173 = vadd.f32 %v141, %v145
      %v174 = vadd.f32 %v142, %v146
      %v175 = vadd.f32 %v143, %v147
      %v176 = vadd.f32 %v144, %v148
      %v177 = vadd.f32 %v173, 0.0
      %v178 = vadd.f32 %v174, 0.0
      %v179 = vadd.f32 %v175, 0.0
      %v180 = vadd.f32 %v176, 0.0
      %v181 = vadd.f32 %v169, %v177
      %v182 = vadd.f32 %v170, %v178
      %v183 = vadd.f32 %v171, %v179
      %v184 = vadd.f32 %v172, %v180
      %185 = vst [vmem:[#allocation8] sm:$0xff] %v181
      %186 = vst [vmem:[#allocation8 + $0x8] sm:$0xff] %v182
      %187 = vst [vmem:[#allocation8 + $0x10] sm:$0xff] %v183
      %188 = vst [vmem:[#allocation8 + $0x18] sm:$0xff] %v184
    $region29: #{tpu_custom_call.1} parent=1 // pred_fallthru
      _
    // Predicated region
    $region30: #{tpu_custom_call.1} parent=1 // pred_check
      _
    $region31: #{tpu_custom_call.1} parent=1 // pred_check_branch
      %190 = sbr.rel (0) target = $region33
    $region32: #{tpu_custom_call.1} parent=1 // pred_region
      %s192 = ssub.s32 512, 512
      %193 = vsyncadd [#allocation4], %s192
      %s195 = sshll.u32 [#allocation7], 4
      %s196 = int_to_ptr.vmem [resolvable:$true] %s195
      %198 = dma.vmem_to_hbm [thread:$0]  %s196, 512, %s2, [#allocation4]
    $region33: #{tpu_custom_call.1} parent=1 // pred_fallthru
      _
    // Predicated region
    $region34: #{tpu_custom_call.1} parent=1 // pred_check
      _
    $region35: #{tpu_custom_call.1} parent=1 // pred_check_branch
      %200 = sbr.rel (0) target = $region37
    $region36: #{tpu_custom_call.1} parent=1 // pred_region
      %s202 = ssub.s32 512, 512
      %203 = vsyncadd [#allocation9], %s202
      %s205 = sshll.u32 [#allocation8], 4
      %s206 = int_to_ptr.vmem [resolvable:$true] %s205
      %208 = dma.vmem_to_hbm [thread:$0]  %s206, 512, %s3, [#allocation9]
    $region37: #{tpu_custom_call.1} parent=1 // pred_fallthru
      _
    // Predicated region
    $region38: #{tpu_custom_call.1} parent=1 // pred_check
      _
    $region39: #{tpu_custom_call.1} parent=1 // pred_check_branch
      %210 = sbr.rel (0) target = $region41
    $region40: #{tpu_custom_call.1} parent=1 // pred_region
      %211 = dma.done [#allocation4], 512
    $region41: #{tpu_custom_call.1} parent=1 // pred_fallthru
      _
    // Predicated region
    $region42: #{tpu_custom_call.1} parent=1 // pred_check
      _
    $region43: #{tpu_custom_call.1} parent=1 // pred_check_branch
      %213 = sbr.rel (0) target = $region45
    $region44: #{tpu_custom_call.1} parent=1 // pred_region
      %214 = dma.done [#allocation9], 512
    $region45: #{tpu_custom_call.1} parent=1 // pred_fallthru
      _
    %215 = vsyncpa [#allocation3], 1
    %216 = vsyncpa [#allocation6], 1
    %217 = vsyncpa [#allocation4], 1
    %218 = vsyncpa [#allocation9], 1

</llo_original>
